<compile_context>
chip_gen: v7x
topology: tpu7x:2x2x1
jax: 0.10.0
libtpu: 0.0.40
codegen_flags: <defaults>
</compile_context>

<pallas_src>
import functools

import jax
import jax.numpy as jnp
from jax.experimental import pallas as pl
from jax.experimental.pallas import tpu as pltpu


_GATHER_MAX_BYTES = 12 * 1024 * 1024    # single-step concurrent-DMA regime
_GATHER_MAX_SEMS = 16                   # reusable DMA-semaphore pool (waves)
_BLOCK_BUDGET_BYTES = 6 * 1024 * 1024   # per-buffer block budget, grid path
_VMEM_LIMIT_FLOOR = 32 * 1024 * 1024    # never below v6e/v7x scoped default
_VMEM_LIMIT_CAP = 48 * 1024 * 1024      # stay well inside v7x's 64 MiB VMEM


def _ceil_to(a, m):
    return (a + m - 1) // m * m


def _vmem_limit_bytes(need_bytes):
    """Explicit scoped-VMEM limit: raise above v5e's 16 MiB default, keep
    headroom for Mosaic internals, cap for v7x's 64 MiB physical VMEM."""
    return int(min(_VMEM_LIMIT_CAP,
                   max(_VMEM_LIMIT_FLOOR, need_bytes + 8 * 1024 * 1024)))


def _dream_gather_kernel(x_hbm, out_ref, buf, sems, *, scale, batch, nsem):
    """Single-step path: concurrent diagonal-slice DMAs + interleaved reduce.

    x_hbm: (B, C, R, L) ref left in HBM (memory_space=pl.ANY)
    out_ref: (1, 1) f32 scalar in SMEM
    buf:  (B, R, L) VMEM scratch
    sems: (nsem,) DMA semaphores, reused in waves when B > nsem
    """
    def slice_copy(b):
        return pltpu.make_async_copy(x_hbm.at[b, b], buf.at[b], sems.at[b % nsem])

    # Prime up to `nsem` concurrent copies.
    for b in range(min(batch, nsem)):
        slice_copy(b).start()

    total = jnp.zeros((), jnp.float32)
    for b in range(batch):
        slice_copy(b).wait()
        # Keep the DMA window full before reducing this slice.
        if b + nsem < batch:
            slice_copy(b + nsem).start()
        # Overlap the reduce of slice b with the remaining in-flight copies.
        total = total + jnp.sum(buf[b].astype(jnp.float32))

    out_ref[0, 0] = total * jnp.float32(scale)


def _dream_grid_kernel(x_ref, out_ref, acc_ref, *, rows, tile_rows, ragged):
    """Grid path: x_ref is the (1, 1, TR, L) tile of output[b, b].

    Batch axis is independent (per-b accumulator reset, per-b SMEM partial),
    so it can be sharded across TensorCores (v7x) via "parallel" semantics.
    """
    rt = pl.program_id(1)
    tile = x_ref[0, 0].astype(jnp.float32)
    if ragged:
        # Last tile may overhang `rows`; mask the out-of-range rows to zero.
        row_ids = rt * tile_rows + jax.lax.broadcasted_iota(jnp.int32, tile.shape, 0)
        tile = jnp.where(row_ids < rows, tile, 0.0)

    @pl.when(rt == 0)
    def _():
        acc_ref[...] = tile          # init-by-assignment: saves a zero store

    @pl.when(rt != 0)
    def _():
        acc_ref[...] += tile         # steady state: pure VPU adds

    @pl.when(rt == pl.num_programs(1) - 1)
    def _():
        out_ref[0, 0] = jnp.sum(acc_ref[...])


def _pick_row_tile(rows, lanes, itemsize, budget_bytes):
    """Return (TR, ragged) for the grid path.

    Prefers the full slice or the largest multiple-of-8 exact divisor of
    `rows` under the per-buffer budget; otherwise caps TR at the budget and
    signals a ragged (masked) tail so an awkward `rows` can never blow the
    scoped VMEM limit.
    """
    if rows * lanes * itemsize <= budget_bytes:
        return rows, False
    best = None
    tr = 8
    while tr < rows:
        if rows % tr == 0 and tr * lanes * itemsize <= budget_bytes:
            best = tr
        tr += 8
    if best is not None:
        return best, False
    cap = max(8, (budget_bytes // (lanes * itemsize)) // 8 * 8)
    cap = min(cap, _ceil_to(rows, 8))
    return cap, True


def simple_dream_loss_hook_batch(output, neuron=False, _force_path=None):
    """Returns -sum_b mean(output[b, b]) as a scalar float32.

    output: [B, C, H, W] array with C >= B.
    """
    B, C, H, W = output.shape
    assert C >= B, "diagonal indexing output[b, b] requires C >= B"

    if neuron:
        # extract_neuron crops each diagonal slice to a single center pixel,
        # so a Pallas kernel would be pure launch + B tiny-DMA latency; per
        # perf review, gather the diagonal pixels directly in JAX.
        r = W // 2   # torch: y = size(3)//2 indexes dim 2
        c = H // 2   # torch: x = size(2)//2 indexes dim 3
        idx = jnp.arange(B)
        vals = output[idx, idx, r, c].astype(jnp.float32)
        return -jnp.sum(vals)

    hw = H * W
    scale = -1.0 / float(hw)  # hoisted mean + negate (all slices share hw)
    itemsize = jnp.dtype(output.dtype).itemsize

    # Lane-dense layout (free reshape of contiguous NCHW channels).
    if hw % 128 == 0:
        R, L = hw // 128, 128
        x = output.reshape(B, C, R, L)
    else:
        # Full-extent last dim: unmasked-as-possible loads, one contiguous DMA
        # per diagonal slice even when W < 128.
        R, L = 1, hw
        x = output.reshape(B, C, 1, hw)

    diag_bytes = B * R * L * itemsize
    use_gather = diag_bytes <= _GATHER_MAX_BYTES      # bytes-only criterion
    if _force_path == "gather":
        use_gather = True
    elif _force_path == "grid":
        use_gather = False

    if use_gather:
        # Single-step kernel: concurrent DMAs + interleaved reduce, one store.
        nsem = min(B, _GATHER_MAX_SEMS)
        buf_padded = B * _ceil_to(R, 8) * _ceil_to(L, 128) * itemsize
        loss = pl.pallas_call(
            functools.partial(_dream_gather_kernel,
                              scale=scale, batch=B, nsem=nsem),
            out_shape=jax.ShapeDtypeStruct((1, 1), jnp.float32),
            in_specs=[pl.BlockSpec(memory_space=pl.ANY)],
            out_specs=pl.BlockSpec(memory_space=pltpu.SMEM),
            scratch_shapes=[
                pltpu.VMEM((B, R, L), x.dtype),
                pltpu.SemaphoreType.DMA((nsem,)),
            ],
            compiler_params=pltpu.CompilerParams(
                vmem_limit_bytes=_vmem_limit_bytes(buf_padded)),
        )(x)
        return loss[0, 0]

    # ---- Pipelined grid path for large diagonal slices ----
    if hw % 128 != 0:
        # Rare: huge, non-128-divisible slice. Zero-pad to lane-dense (R, 128)
        # (zeros don't change the sum; `scale` uses the original hw).
        hw_pad = _ceil_to(hw, 128)
        xf = jnp.pad(output.reshape(B, C, hw), ((0, 0), (0, 0), (0, hw_pad - hw)))
        R, L = hw_pad // 128, 128
        x = xf.reshape(B, C, R, L)

    TR, ragged = _pick_row_tile(R, L, itemsize, _BLOCK_BUDGET_BYTES)
    RT = pl.cdiv(R, TR)
    block_padded = _ceil_to(TR, 8) * _ceil_to(L, 128) * itemsize
    acc_padded = _ceil_to(TR, 8) * _ceil_to(L, 128) * 4
    vmem_need = 2 * block_padded + acc_padded   # double-buffered input + f32 acc

    partials = pl.pallas_call(
        functools.partial(_dream_grid_kernel,
                          rows=R, tile_rows=TR, ragged=ragged),
        out_shape=jax.ShapeDtypeStruct((B, 1), jnp.float32),
        grid_spec=pltpu.PrefetchScalarGridSpec(
            num_scalar_prefetch=0,
            grid=(B, RT),
            in_specs=[
                pl.BlockSpec((1, 1, TR, L), lambda b, rt: (b, b, rt, 0)),
            ],
            # Per-batch partial sum -> batch axis is independent and can be
            # split across TensorCores on v7x.
            out_specs=pl.BlockSpec((1, 1), lambda b, rt: (b, 0),
                                   memory_space=pltpu.SMEM),
            scratch_shapes=[pltpu.VMEM((TR, L), jnp.float32)],
        ),
        compiler_params=pltpu.CompilerParams(
            dimension_semantics=("parallel", "arbitrary"),
            vmem_limit_bytes=_vmem_limit_bytes(vmem_need)),
    )(x)
    # TODO(synk): if "parallel" alone doesn't shard across v7x cores, switch
    # axis 0 to pltpu.CORE_PARALLEL (the per-batch partials already make it safe).
    return jnp.sum(partials) * jnp.float32(scale)


def _reference(output, neuron=False):
    """Pure-JAX mirror of the PyTorch module (incl. exact neuron crop)."""
    if neuron:
        xc = output.shape[2] // 2   # torch: x = size(2)//2
        yc = output.shape[3] // 2   # torch: y = size(3)//2
        output = output[:, :, yc:yc + 1, xc:xc + 1]
    B = output.shape[0]
    loss = 0.0
    for b in range(B):
        loss = loss + jnp.mean(output[b, b].astype(jnp.float32))
    return -loss


if __name__ == "__main__":
    k0, k1 = jax.random.split(jax.random.PRNGKey(0))

    # Primary shape: B=2, C=4, 16x16 (hw divisible by 128 -> lane-dense tiles).
    B, C, H, W = 2, 4, 16, 16
    x = jax.random.normal(k0, (B, C, H, W), dtype=jnp.float32)
    ref = _reference(x)

    # Primary path: single-step concurrent-DMA gather.
    loss = simple_dream_loss_hook_batch(x)
    jax.block_until_ready(loss)
    assert jnp.allclose(loss, ref, atol=1e-5, rtol=1e-5), (loss, ref)

    # Also exercise the tiled / pipelined grid path (parallel batch partials).
    loss_grid = simple_dream_loss_hook_batch(x, _force_path="grid")
    jax.block_until_ready(loss_grid)
    assert jnp.allclose(loss_grid, ref, atol=1e-5, rtol=1e-5), (loss_grid, ref)

    # Non-128-divisible spatial size -> lane-dense full-extent last dim (gather).
    x2 = jax.random.normal(k1, (2, 3, 6, 10), dtype=jnp.float32)
    ref2 = _reference(x2)
    loss2 = simple_dream_loss_hook_batch(x2)
    jax.block_until_ready(loss2)
    assert jnp.allclose(loss2, ref2, atol=1e-5, rtol=1e-5), (loss2, ref2)

    # neuron=True: plain-JAX diagonal center-pixel gather (per perf review).
    ref_n = _reference(x2, neuron=True)
    loss_n = simple_dream_loss_hook_batch(x2, neuron=True)
    jax.block_until_ready(loss_n)
    assert jnp.allclose(loss_n, ref_n, atol=1e-6, rtol=1e-6), (loss_n, ref_n)

    print("KERNEL_OK")
</pallas_src>

<mosaic_0001>
module attributes {stable_mosaic.version = 11 : i64} {
  func.func @_dream_gather_kernel(%arg0: memref<2x4x2x128xf32, #tpu.memory_space<any>>, %arg1: memref<1x1xf32, #tpu.memory_space<smem>>, %arg2: memref<2x2x128xf32, #tpu.memory_space<vmem>>, %arg3: memref<2x!tpu.dma_semaphore, #tpu.memory_space<semaphore_mem>>) attributes {dimension_semantics = [], scalar_prefetch = 0 : i64, scratch_operands = 2 : i64, tpu.core_type = #tpu.core_type<tc>} {
    %c0_i32 = arith.constant 0 : i32
    %c0_i32_0 = arith.constant 0 : i32
    %c0_i32_1 = arith.constant 0 : i32
    %c0_i32_2 = arith.constant 0 : i32
    %c0_i32_3 = arith.constant 0 : i32
    %c0_i32_4 = arith.constant 0 : i32
    %0 = tpu.memref_slice %arg0[%c0_i32, %c0_i32_0, %c0_i32_3, %c0_i32_4] : memref<2x4x2x128xf32, #tpu.memory_space<any>> -> memref<1x1x2x128xf32, #tpu.memory_space<any>>
    %1 = tpu.memref_squeeze %0 : memref<1x1x2x128xf32, #tpu.memory_space<any>> -> memref<2x128xf32, #tpu.memory_space<any>>
    %c0_i32_5 = arith.constant 0 : i32
    %c0_i32_6 = arith.constant 0 : i32
    %2 = tpu.memref_slice %arg2[%c0_i32_1, %c0_i32_5, %c0_i32_6] : memref<2x2x128xf32, #tpu.memory_space<vmem>> -> memref<1x2x128xf32, #tpu.memory_space<vmem>>
    %3 = tpu.memref_squeeze %2 : memref<1x2x128xf32, #tpu.memory_space<vmem>> -> memref<2x128xf32, #tpu.memory_space<vmem>>
    %4 = tpu.memref_slice %arg3[%c0_i32_2] : memref<2x!tpu.dma_semaphore, #tpu.memory_space<semaphore_mem>> -> memref<1x!tpu.dma_semaphore, #tpu.memory_space<semaphore_mem>>
    %5 = tpu.memref_squeeze %4 : memref<1x!tpu.dma_semaphore, #tpu.memory_space<semaphore_mem>> -> memref<!tpu.dma_semaphore, #tpu.memory_space<semaphore_mem>>
    tpu.enqueue_dma source(%1 : memref<2x128xf32, #tpu.memory_space<any>>) target(%3 : memref<2x128xf32, #tpu.memory_space<vmem>>) target_semaphore(%5 : memref<!tpu.dma_semaphore, #tpu.memory_space<semaphore_mem>>)
    %c1_i32 = arith.constant 1 : i32
    %c1_i32_7 = arith.constant 1 : i32
    %c1_i32_8 = arith.constant 1 : i32
    %c1_i32_9 = arith.constant 1 : i32
    %c0_i32_10 = arith.constant 0 : i32
    %c0_i32_11 = arith.constant 0 : i32
    %6 = tpu.memref_slice %arg0[%c1_i32, %c1_i32_7, %c0_i32_10, %c0_i32_11] : memref<2x4x2x128xf32, #tpu.memory_space<any>> -> memref<1x1x2x128xf32, #tpu.memory_space<any>>
    %7 = tpu.memref_squeeze %6 : memref<1x1x2x128xf32, #tpu.memory_space<any>> -> memref<2x128xf32, #tpu.memory_space<any>>
    %c0_i32_12 = arith.constant 0 : i32
    %c0_i32_13 = arith.constant 0 : i32
    %8 = tpu.memref_slice %arg2[%c1_i32_8, %c0_i32_12, %c0_i32_13] : memref<2x2x128xf32, #tpu.memory_space<vmem>> -> memref<1x2x128xf32, #tpu.memory_space<vmem>>
    %9 = tpu.memref_squeeze %8 : memref<1x2x128xf32, #tpu.memory_space<vmem>> -> memref<2x128xf32, #tpu.memory_space<vmem>>
    %10 = tpu.memref_slice %arg3[%c1_i32_9] : memref<2x!tpu.dma_semaphore, #tpu.memory_space<semaphore_mem>> -> memref<1x!tpu.dma_semaphore, #tpu.memory_space<semaphore_mem>>
    %11 = tpu.memref_squeeze %10 : memref<1x!tpu.dma_semaphore, #tpu.memory_space<semaphore_mem>> -> memref<!tpu.dma_semaphore, #tpu.memory_space<semaphore_mem>>
    tpu.enqueue_dma source(%7 : memref<2x128xf32, #tpu.memory_space<any>>) target(%9 : memref<2x128xf32, #tpu.memory_space<vmem>>) target_semaphore(%11 : memref<!tpu.dma_semaphore, #tpu.memory_space<semaphore_mem>>)
    %c0_i32_14 = arith.constant 0 : i32
    %c0_i32_15 = arith.constant 0 : i32
    %c0_i32_16 = arith.constant 0 : i32
    %c0_i32_17 = arith.constant 0 : i32
    %c0_i32_18 = arith.constant 0 : i32
    %c0_i32_19 = arith.constant 0 : i32
    %12 = tpu.memref_slice %arg0[%c0_i32_14, %c0_i32_15, %c0_i32_18, %c0_i32_19] : memref<2x4x2x128xf32, #tpu.memory_space<any>> -> memref<1x1x2x128xf32, #tpu.memory_space<any>>
    %13 = tpu.memref_squeeze %12 : memref<1x1x2x128xf32, #tpu.memory_space<any>> -> memref<2x128xf32, #tpu.memory_space<any>>
    %c0_i32_20 = arith.constant 0 : i32
    %c0_i32_21 = arith.constant 0 : i32
    %14 = tpu.memref_slice %arg2[%c0_i32_16, %c0_i32_20, %c0_i32_21] : memref<2x2x128xf32, #tpu.memory_space<vmem>> -> memref<1x2x128xf32, #tpu.memory_space<vmem>>
    %15 = tpu.memref_squeeze %14 : memref<1x2x128xf32, #tpu.memory_space<vmem>> -> memref<2x128xf32, #tpu.memory_space<vmem>>
    %16 = tpu.memref_slice %arg3[%c0_i32_17] : memref<2x!tpu.dma_semaphore, #tpu.memory_space<semaphore_mem>> -> memref<1x!tpu.dma_semaphore, #tpu.memory_space<semaphore_mem>>
    %17 = tpu.memref_squeeze %16 : memref<1x!tpu.dma_semaphore, #tpu.memory_space<semaphore_mem>> -> memref<!tpu.dma_semaphore, #tpu.memory_space<semaphore_mem>>
    tpu.wait_dma2 semaphore(%17 : memref<!tpu.dma_semaphore, #tpu.memory_space<semaphore_mem>>) src(%13 : memref<2x128xf32, #tpu.memory_space<any>>) dst(%15 : memref<2x128xf32, #tpu.memory_space<vmem>>)
    %c0 = arith.constant 0 : index
    %c0_22 = arith.constant 0 : index
    %c0_23 = arith.constant 0 : index
    %18 = vector.load %arg2[%c0, %c0_22, %c0_23] : memref<2x2x128xf32, #tpu.memory_space<vmem>>, vector<1x2x128xf32>
    %19 = vector.shape_cast %18 : vector<1x2x128xf32> to vector<2x128xf32>
    %20 = vector.shape_cast %19 : vector<2x128xf32> to vector<1x2x128xf32>
    %cst = arith.constant dense<0.000000e+00> : vector<1xf32>
    %21 = vector.multi_reduction <add>, %20, %cst [1, 2] : vector<1x2x128xf32> to vector<1xf32>
    %22 = vector.shape_cast %21 : vector<1xf32> to vector<1x1x1xf32>
    %23 = vector.extract %22[0, 0, 0] : f32 from vector<1x1x1xf32>
    %cst_24 = arith.constant 0.000000e+00 : f32
    %24 = arith.addf %cst_24, %23 : f32
    %c1_i32_25 = arith.constant 1 : i32
    %c1_i32_26 = arith.constant 1 : i32
    %c1_i32_27 = arith.constant 1 : i32
    %c1_i32_28 = arith.constant 1 : i32
    %c0_i32_29 = arith.constant 0 : i32
    %c0_i32_30 = arith.constant 0 : i32
    %25 = tpu.memref_slice %arg0[%c1_i32_25, %c1_i32_26, %c0_i32_29, %c0_i32_30] : memref<2x4x2x128xf32, #tpu.memory_space<any>> -> memref<1x1x2x128xf32, #tpu.memory_space<any>>
    %26 = tpu.memref_squeeze %25 : memref<1x1x2x128xf32, #tpu.memory_space<any>> -> memref<2x128xf32, #tpu.memory_space<any>>
    %c0_i32_31 = arith.constant 0 : i32
    %c0_i32_32 = arith.constant 0 : i32
    %27 = tpu.memref_slice %arg2[%c1_i32_27, %c0_i32_31, %c0_i32_32] : memref<2x2x128xf32, #tpu.memory_space<vmem>> -> memref<1x2x128xf32, #tpu.memory_space<vmem>>
    %28 = tpu.memref_squeeze %27 : memref<1x2x128xf32, #tpu.memory_space<vmem>> -> memref<2x128xf32, #tpu.memory_space<vmem>>
    %29 = tpu.memref_slice %arg3[%c1_i32_28] : memref<2x!tpu.dma_semaphore, #tpu.memory_space<semaphore_mem>> -> memref<1x!tpu.dma_semaphore, #tpu.memory_space<semaphore_mem>>
    %30 = tpu.memref_squeeze %29 : memref<1x!tpu.dma_semaphore, #tpu.memory_space<semaphore_mem>> -> memref<!tpu.dma_semaphore, #tpu.memory_space<semaphore_mem>>
    tpu.wait_dma2 semaphore(%30 : memref<!tpu.dma_semaphore, #tpu.memory_space<semaphore_mem>>) src(%26 : memref<2x128xf32, #tpu.memory_space<any>>) dst(%28 : memref<2x128xf32, #tpu.memory_space<vmem>>)
    %c1 = arith.constant 1 : index
    %c0_33 = arith.constant 0 : index
    %c0_34 = arith.constant 0 : index
    %31 = vector.load %arg2[%c1, %c0_33, %c0_34] : memref<2x2x128xf32, #tpu.memory_space<vmem>>, vector<1x2x128xf32>
    %32 = vector.shape_cast %31 : vector<1x2x128xf32> to vector<2x128xf32>
    %33 = vector.shape_cast %32 : vector<2x128xf32> to vector<1x2x128xf32>
    %cst_35 = arith.constant dense<0.000000e+00> : vector<1xf32>
    %34 = vector.multi_reduction <add>, %33, %cst_35 [1, 2] : vector<1x2x128xf32> to vector<1xf32>
    %35 = vector.shape_cast %34 : vector<1xf32> to vector<1x1x1xf32>
    %36 = vector.extract %35[0, 0, 0] : f32 from vector<1x1x1xf32>
    %37 = arith.addf %24, %36 : f32
    %cst_36 = arith.constant -3.906250e-03 : f32
    %38 = arith.mulf %37, %cst_36 : f32
    %c0_37 = arith.constant 0 : index
    %c0_38 = arith.constant 0 : index
    %39 = memref.load %arg1[%c0_37, %c0_38] : memref<1x1xf32, #tpu.memory_space<smem>>
    memref.store %38, %arg1[%c0_37, %c0_38] : memref<1x1xf32, #tpu.memory_space<smem>>
    return
  }
}

</mosaic_0001>

<llo_original>
// kernel: tpu_custom_call.1
$region0: #{tpu_custom_call.1}
  #allocation0 [shape = 'u32[]', space=smem, size = 0x4, offset = 0x4, fixed_abs, tag = 'smem constant byte address 0x4 - core index']
  #allocation1 [shape = 'u32[144,128]{1,0:T(1,128)}', space=vmem, size = 0x12000, scoped, tag = 'internal scratch']
  #allocation2 [shape = 'f32[2,2,128]{2,1,0:T(2,128)}', space=vmem, size = 0x800, scoped, tag = 'scratch operand']
  #allocation3 [shape = 's32[2]{0}', space=sflag, size = 0x8, scoped, tag = 'scratch operand']
  #allocation6 [shape = 's32[]', space=sflag, size = 0x4, offset = 0, fixed_abs, tag = 'sflag constant byte address 0x0 - dummy sync flag']
  #allocation7 [shape = 's32[]', space=sflag, size = 0x4, offset = 0, fixed_abs, tag = 'sflag constant byte address 0x0 - dummy sync flag']
  #allocation8 [shape = 'u32[]', space=smem, size = 0x4, offset = 0x44, fixed_abs, tag = 'smem constant byte address 0x44 - assertion arg 0']
  #allocation9 [shape = 'u32[]', space=smem, size = 0x4, offset = 0x48, fixed_abs, tag = 'smem constant byte address 0x48 - assertion arg 1']
  #allocation10 [shape = 's32[]', space=sflag, size = 0x4, offset = 0, fixed_abs, tag = 'sflag constant byte address 0x0 - dummy sync flag']
  #allocation11 [shape = 's32[]', space=sflag, size = 0x4, offset = 0, fixed_abs, tag = 'sflag constant byte address 0x0 - dummy sync flag']
  %s0 = inlined_call_operand.hbm [shape: f32[2,4,2,128], index: 0, kind: input, shape index: {}]
  %s1 = inlined_call_operand.hbm [shape: f32[1,1], index: 1, kind: output, shape index: {}]
  %s2 = sld [smem:[#allocation0]]
  $region18: #{tpu_custom_call.1} parent=0
    _
  %s4 = ssub.s32 1, %s2
  %s5 = scalar_select 0, %s4, %s2
  $region1: #{tpu_custom_call.1} parent=0
    #allocation4 [shape = 'u8[512]{0}', space=smem, size = 0x200, scoped, tag = 'output window, operand 0, single buffered']
    #allocation5 [shape = 's32[1]{0}', space=sflag, size = 0x4, scoped, tag = 'scoped memory for tpu_custom_call.1']
    %6 = vsyncpa [#allocation5], 0
    // Predicated region
    $region2: #{tpu_custom_call.1} parent=1 // pred_check
      _
    $region3: #{tpu_custom_call.1} parent=1 // pred_check_branch
      %8 = sbr.rel target = $region5
    $region4: #{tpu_custom_call.1} parent=1 // pred_region
      %9 = sst [smem:[#allocation8]] [#allocation7]
      %10 = sst [smem:[#allocation9]] [#allocation6]
    $region5: #{tpu_custom_call.1} parent=1 // pred_fallthru
      _
    %12 = shalt.err (0)
    %s14 = sshll.u32 [#allocation2], 4
    %s15 = int_to_ptr.vmem [resolvable:$true] %s14
    %17 = dma.hbm_to_vmem [thread:$0]  %s0, 32, %s15, [#allocation3]
    %s18 = scalar_lea.hbm %s0, 160
    %s19 = scalar_lea.vmem [#allocation2], 2
    %s20 = scalar_lea.sflag [#allocation3], 1
    // Predicated region
    $region6: #{tpu_custom_call.1} parent=1 // pred_check
      _
    $region7: #{tpu_custom_call.1} parent=1 // pred_check_branch
      %22 = sbr.rel target = $region9
    $region8: #{tpu_custom_call.1} parent=1 // pred_region
      %23 = sst [smem:[#allocation8]] [#allocation11]
      %24 = sst [smem:[#allocation9]] [#allocation10]
    $region9: #{tpu_custom_call.1} parent=1 // pred_fallthru
      _
    %26 = shalt.err (0)
    %s28 = sshll.u32 %s19, 4
    %s29 = int_to_ptr.vmem [resolvable:$true] %s28
    %31 = dma.hbm_to_vmem [thread:$0]  %s18, 32, %s29, %s20
    %s32 = smul.u32 2, 1
    %s33 = sshll.u32 %s32, 4
    %34 = dma.done [#allocation3], %s33
    %v35 = vld [vmem:[#allocation2] sm:$0x3]
    %vm36 = vcmask 1041408
    %v37 = vsel %vm36, %v35, 0.0
    %38 = vadd.xlane.f32.xlu0 %v37
    %v39 = vpop.xlane.xlu0 %38
    %v40 = vrot.slane %v39, 4
    %v41 = vadd.f32 %v39, %v40
    %v42 = vrot.slane %v41, 2
    %v43 = vadd.f32 %v41, %v42
    %v44 = vrot.slane %v43, 1
    %v45 = vadd.f32 %v43, %v44
    %s46 = vtos %v45
    %s47 = sadd.f32 %s46, 0.0
    %s48 = sshll.u32 %s32, 4
    %49 = dma.done %s20, %s48
    %v50 = vld [vmem:[%s19] sm:$0x3]
    %v51 = vsel %vm36, %v50, 0.0
    %52 = vadd.xlane.f32.xlu0 %v51
    %v53 = vpop.xlane.xlu0 %52
    %v54 = vrot.slane %v53, 4
    %v55 = vadd.f32 %v53, %v54
    %v56 = vrot.slane %v55, 2
    %v57 = vadd.f32 %v55, %v56
    %v58 = vrot.slane %v57, 1
    %v59 = vadd.f32 %v57, %v58
    %s60 = vtos %v59
    %s61 = sadd.f32 %s47, %s60
    %s62 = smul.f32 %s61, -0.00390625
    %s63 = scalar_lea.smem [#allocation4], 0
    %64 = sst [smem:[%s63]] %s62
    // Predicated region
    $region10: #{tpu_custom_call.1} parent=1 // pred_check
      _
    $region11: #{tpu_custom_call.1} parent=1 // pred_check_branch
      %66 = sbr.rel (0) target = $region13
    $region12: #{tpu_custom_call.1} parent=1 // pred_region
      %s68 = ssub.s32 16, 16
      %69 = vsyncadd [#allocation5], %s68
      %72 = dma.smem_to_hbm [#allocation4], 16, %s1, [#allocation5]
    $region13: #{tpu_custom_call.1} parent=1 // pred_fallthru
      _
    // Predicated region
    $region14: #{tpu_custom_call.1} parent=1 // pred_check
      _
    $region15: #{tpu_custom_call.1} parent=1 // pred_check_branch
      %74 = sbr.rel (0) target = $region17
    $region16: #{tpu_custom_call.1} parent=1 // pred_region
      %75 = dma.done [#allocation5], 16
    $region17: #{tpu_custom_call.1} parent=1 // pred_fallthru
      _
    %76 = sfence
    %77 = vsyncpa [#allocation5], 1
  %78 = vsyncmov [#allocation3]
  %s79 = vpop.sfrf %78
  %p80 = scmp.eq.s32.totalorder %s79, 0
  %p81 = pneg %p80
  %83 = shalt.err (%p81)
  %s84 = scalar_lea.sflag [#allocation3], 1
  %85 = vsyncmov %s84
  %s86 = vpop.sfrf %85
  %p87 = scmp.eq.s32.totalorder %s86, 0
  %p88 = pneg %p87
  %90 = shalt.err (%p88)

</llo_original>
